<compile_context>
chip_gen: v7x
topology: tpu7x:2x2x1
jax: 0.10.0
libtpu: 0.0.40
codegen_flags: <defaults>
</compile_context>

<pallas_src>
import functools

import jax
import jax.numpy as jnp
from jax import lax
from jax.experimental import pallas as pl
from jax.experimental.pallas import tpu as pltpu

_LANE = 128


def _round_up(x, m):
    return -(-x // m) * m


def _round_down8(x):
    return max(8, (x // 8) * 8)


def _combined_loss_kernel(pred_ref, aux_ref, out_ref, acc_ref, *,
                          gamma, date_weight, batch, num_classes,
                          tile_b, tiles_per_split):
    """One (split, step) grid point: accumulate per-row loss partials for a tile.

    pred_ref: (tile_b, C+1) VMEM, input dtype -- logits + date prediction
    aux_ref:  (tile_b, 3)   VMEM f32          -- [target, date_lo, date_hi]
    out_ref:  (8, 1)        VMEM f32          -- per-split partial (row 0, rest 0)
    acc_ref:  (tile_b, 1)   VMEM f32 scratch  -- per-row loss accumulator
    """
    step = pl.program_id(1)

    @pl.when(step == 0)
    def _init():
        acc_ref[...] = jnp.zeros_like(acc_ref)

    # Row-validity mask: handles the padded last tile and the clamped
    # (duplicated) tiles of a trailing core split.  Masking is a select
    # applied AFTER per-row reductions, so garbage/NaN in invalid rows never
    # contaminates valid rows.
    gtile = pl.program_id(0) * tiles_per_split + step
    row = gtile * tile_b + lax.broadcasted_iota(jnp.int32, (tile_b, 1), 0)
    valid = row < batch                                            # (tile_b, 1)

    pred = pred_ref[...]                                           # (tile_b, C+1)
    logits = pred[:, :num_classes].astype(jnp.float32)             # (tile_b, C)
    date_pred = pred[:, num_classes:num_classes + 1].astype(jnp.float32)

    aux = aux_ref[...]                                             # (tile_b, 3) f32
    target = aux[:, 0:1].astype(jnp.int32)                         # (tile_b, 1)
    date_lo = aux[:, 1:2]
    date_hi = aux[:, 2:3]

    # ---- category term: CrossEntropy (gamma == 0) or FocalLoss, via one-hot ----
    m = jnp.max(logits, axis=-1, keepdims=True)
    shifted = logits - m
    lse = jnp.log(jnp.sum(jnp.exp(shifted), axis=-1, keepdims=True))   # (tile_b, 1)
    onehot = (lax.broadcasted_iota(jnp.int32, (tile_b, num_classes), 1) == target)
    picked = jnp.sum(jnp.where(onehot, shifted, 0.0), axis=-1, keepdims=True)
    log_p = picked - lse                                           # (tile_b, 1)

    if gamma > 0.0:
        p = jnp.exp(log_p)
        omp = jnp.maximum(1.0 - p, 0.0)
        g_int = int(gamma)
        if float(g_int) == gamma and 1 <= g_int <= 4:
            # integer gamma: plain multiplies (no EUP exp/log pow)
            focal = omp
            for _ in range(g_int - 1):
                focal = focal * omp
        else:
            focal = omp ** gamma
        cat = -focal * log_p
    else:
        cat = -log_p

    # ---- date term (DateLossMSE) ----
    err = (jnp.maximum(date_lo - date_pred, 0.0)
           + jnp.maximum(date_pred - date_hi, 0.0))

    # Fold the combined-loss weights per row; sum/mean is deferred to finalize.
    per_row = (1.0 - date_weight) * cat + date_weight * (err * err)
    acc_ref[...] += jnp.where(valid, per_row, 0.0)

    # ---- finalize this core split's partial (reduction axis is last; out block
    # is written back exactly once on its final step) ----
    @pl.when(step == pl.num_programs(1) - 1)
    def _finalize():
        total = jnp.sum(acc_ref[...]) * (1.0 / batch)
        row0 = lax.broadcasted_iota(jnp.int32, (8, 1), 0) == 0
        out_ref[...] = jnp.where(row0, total, 0.0)                 # (8, 1)


def _device_kind():
    try:
        return (jax.devices()[0].device_kind or "").lower()
    except Exception:
        return ""


def _vmem_caps():
    """(pipeline budget bytes, vmem_limit_bytes) for the current TPU generation."""
    kind = _device_kind()
    phys = None
    try:
        phys = int(getattr(pltpu.get_tpu_info(), "vmem_capacity_bytes", 0)) or None
    except Exception:
        phys = None
    if phys is None:
        phys = (64 << 20) if "v7" in kind else (128 << 20)
    if "v5 lite" in kind or "v5e" in kind or "v5lite" in kind:
        budget = 12 << 20        # v5e: most HBM-bound, small scoped default
    else:
        budget = min(40 << 20, phys // 2)
    limit = min(phys - (8 << 20), budget + (24 << 20))
    return budget, max(limit, 32 << 20)


def _num_tensorcores():
    try:
        dev = jax.devices()[0]
    except Exception:
        return 1
    for attr in ("num_cores", "core_count", "num_tensorcores"):
        v = getattr(dev, attr, None)
        if isinstance(v, int) and 0 < v <= 8:
            return v
    try:
        info = pltpu.get_tpu_info()
        for attr in ("num_cores", "core_count", "tensorcore_count"):
            v = getattr(info, attr, None)
            if isinstance(v, int) and 0 < v <= 8:
                return v
    except Exception:
        pass
    return 2 if "v7" in _device_kind() else 1


def _choose_tile_b(batch, pred_cols, pred_itemsize, budget, limit,
                   pred_bufs=3, aux_bufs=2):
    """Largest row tile whose real VMEM footprint fits the budget."""
    # Last dims lane-pad to 128 in VMEM; each pipelined input holds `bufs`
    # copies; plus the (tile_b, 1) per-row accumulator scratch.
    per_row = (_round_up(pred_cols, _LANE) * pred_itemsize * pred_bufs
               + _LANE * 4 * aux_bufs
               + _LANE * 4)
    fixed = 2 * 8 * _LANE * 4        # (8, 1) output block, double buffered
    tile = _round_down8((budget - fixed) // per_row)
    if tile < 256:
        # Don't degenerate to tiny row tiles if the raised limit can hold 256.
        tile = min(256, _round_down8((limit - fixed) // per_row))
    tile = min(tile, 8192)
    return batch if batch <= tile else tile


def catena_combined_loss(predictions, category_target, date_range, *,
                         gamma: float = 0.0, date_weight: float = 0.2,
                         tile_b=None, force_pallas: bool = False):
    """JAX/Pallas equivalent of CatenaCombinedLoss.forward (returns scalar loss)."""
    B, c_plus_1 = predictions.shape
    C = c_plus_1 - 1

    # Small/medium problems: pallas_call launch + per-step overhead loses to
    # XLA's fused reduction (threshold raised per perf review).
    if (not force_pallas
            and predictions.size * predictions.dtype.itemsize < 4 * 1024 * 1024):
        return _reference_loss(predictions, category_target, date_range,
                               gamma=gamma, date_weight=date_weight)

    budget, vmem_limit = _vmem_caps()
    pred_itemsize = predictions.dtype.itemsize
    if tile_b is None:
        tile_b = _choose_tile_b(B, c_plus_1, pred_itemsize, budget, vmem_limit)
    else:
        tile_b = B if tile_b >= B else max(8, (tile_b // 8) * 8)

    total_tiles = -(-B // tile_b)
    num_splits = max(1, min(_num_tensorcores(), total_tiles))
    tiles_per_split = -(-total_tiles // num_splits)

    def row_map(c, i):
        # Clamp so a trailing core split never indexes past the last tile;
        # the duplicated rows are masked out inside the kernel.
        return (jnp.minimum(c * tiles_per_split + i, total_tiles - 1), 0)

    # Fuse target + date_range into one lane-padded f32 aux array -> one DMA.
    aux = jnp.concatenate(
        [category_target.reshape(B, 1).astype(jnp.float32),
         date_range.reshape(B, 2).astype(jnp.float32)], axis=1)      # (B, 3)

    kernel = functools.partial(
        _combined_loss_kernel, gamma=float(gamma), date_weight=float(date_weight),
        batch=B, num_classes=C, tile_b=tile_b, tiles_per_split=tiles_per_split)

    cost = pl.CostEstimate(
        flops=int(B * (7 * C + 24)),
        transcendentals=int(B * (C + 2)),
        bytes_accessed=int(B * c_plus_1 * pred_itemsize + B * 3 * 4
                           + num_splits * 8 * 4))

    def run(use_buffered, core_parallel):
        if use_buffered:
            pred_spec = pl.BlockSpec((tile_b, c_plus_1), row_map,
                                     pipeline_mode=pl.Buffered(3))
        else:
            pred_spec = pl.BlockSpec((tile_b, c_plus_1), row_map)
        if core_parallel:
            dims = (pltpu.CORE_PARALLEL, pltpu.ARBITRARY)
        else:
            dims = ("parallel", "arbitrary")
        return pl.pallas_call(
            kernel,
            out_shape=jax.ShapeDtypeStruct((num_splits * 8, 1), jnp.float32),
            grid_spec=pltpu.PrefetchScalarGridSpec(
                num_scalar_prefetch=0,
                grid=(num_splits, tiles_per_split),
                in_specs=[pred_spec,                            # predictions (native dtype)
                          pl.BlockSpec((tile_b, 3), row_map)],  # fused [target, lo, hi]
                out_specs=pl.BlockSpec((8, 1), lambda c, i: (c, 0)),
                scratch_shapes=[pltpu.VMEM((tile_b, 1), jnp.float32)]),
            compiler_params=pltpu.CompilerParams(
                dimension_semantics=dims,
                vmem_limit_bytes=int(vmem_limit)),
            cost_estimate=cost,
        )(predictions, aux)

    # Preferred config first; degrade gracefully if this TPU / JAX build rejects
    # Buffered(3) or CORE_PARALLEL (results are identical either way).
    attempts = [(True, num_splits > 1), (False, num_splits > 1)]
    if num_splits > 1:
        attempts.append((False, False))
    partials, last_err = None, None
    for use_buf, core_par in attempts:
        try:
            partials = run(use_buf, core_par)
            last_err = None
            break
        except Exception as e:   # feature fallback only; math is unchanged
            last_err = e
    if last_err is not None:
        raise last_err

    # Each split's partial is already weighted and divided by the true B;
    # non-finalize rows are zero, so a plain sum gives the loss.
    return jnp.sum(partials)


def _reference_loss(predictions, category_target, date_range,
                    gamma=0.0, date_weight=0.2):
    """Pure-JAX reference matching the PyTorch semantics (also the small-size path)."""
    predictions = predictions.astype(jnp.float32)
    logits = predictions[:, :-1]
    date_pred = predictions[:, -1]
    log_probs = jax.nn.log_softmax(logits, axis=-1)
    idx = category_target.astype(jnp.int32)[:, None]
    log_p = jnp.take_along_axis(log_probs, idx, axis=-1)[:, 0]
    if gamma > 0.0:
        p = jnp.exp(log_p)
        cat = jnp.mean(-(jnp.maximum(1.0 - p, 0.0) ** gamma) * log_p)
    else:
        cat = jnp.mean(-log_p)
    dr = date_range.astype(jnp.float32)
    err = (jnp.maximum(dr[:, 0] - date_pred, 0.0)
           + jnp.maximum(date_pred - dr[:, 1], 0.0))
    date = jnp.mean(err ** 2)
    return (1.0 - date_weight) * cat + date_weight * date


if __name__ == "__main__":
    root = jax.random.PRNGKey(0)

    def make_inputs(key, batch, num_categories):
        k1, k2, k3, k4 = jax.random.split(key, 4)
        predictions = jax.random.normal(k1, (batch, num_categories + 1),
                                        dtype=jnp.float32)
        category_target = jax.random.randint(k2, (batch,), 0, num_categories,
                                             dtype=jnp.int32)
        lo = jax.random.normal(k3, (batch,), dtype=jnp.float32)
        hi = lo + jnp.abs(jax.random.normal(k4, (batch,), dtype=jnp.float32))
        return predictions, category_target, jnp.stack([lo, hi], axis=-1)

    k_small, k_mid, k_big = jax.random.split(root, 3)

    # 1) small demo shape (B=8, 16 categories), default config (CrossEntropy path)
    p, t, dr = make_inputs(k_small, 8, 16)
    loss = jax.block_until_ready(
        catena_combined_loss(p, t, dr, gamma=0.0, date_weight=0.2,
                             force_pallas=True))
    ref = _reference_loss(p, t, dr, gamma=0.0, date_weight=0.2)
    assert jnp.allclose(loss, ref, rtol=1e-5, atol=1e-5), (loss, ref)

    # 2) FocalLoss: integer gamma (multiply path) and non-integer gamma (pow path)
    loss_f2 = jax.block_until_ready(
        catena_combined_loss(p, t, dr, gamma=2.0, date_weight=0.3,
                             force_pallas=True))
    ref_f2 = _reference_loss(p, t, dr, gamma=2.0, date_weight=0.3)
    assert jnp.allclose(loss_f2, ref_f2, rtol=1e-5, atol=1e-5), (loss_f2, ref_f2)

    loss_f15 = jax.block_until_ready(
        catena_combined_loss(p, t, dr, gamma=1.5, date_weight=0.3,
                             force_pallas=True))
    ref_f15 = _reference_loss(p, t, dr, gamma=1.5, date_weight=0.3)
    assert jnp.allclose(loss_f15, ref_f15, rtol=1e-5, atol=1e-5), (loss_f15, ref_f15)

    # 3) multi-tile + core-split + partial-tile masking path (B=300, tile_b=128)
    p2, t2, dr2 = make_inputs(k_mid, 300, 16)
    loss2 = jax.block_until_ready(
        catena_combined_loss(p2, t2, dr2, gamma=0.0, date_weight=0.2,
                             tile_b=128, force_pallas=True))
    ref2 = _reference_loss(p2, t2, dr2, gamma=0.0, date_weight=0.2)
    assert jnp.allclose(loss2, ref2, rtol=1e-4, atol=1e-5), (loss2, ref2)

    # 4) auto tile chooser + corrected VMEM model (B=4096, focal path)
    p3, t3, dr3 = make_inputs(k_big, 4096, 16)
    loss3 = jax.block_until_ready(
        catena_combined_loss(p3, t3, dr3, gamma=2.0, date_weight=0.2,
                             force_pallas=True))
    ref3 = _reference_loss(p3, t3, dr3, gamma=2.0, date_weight=0.2)
    assert jnp.allclose(loss3, ref3, rtol=1e-4, atol=1e-5), (loss3, ref3)

    print("KERNEL_OK")
</pallas_src>

<mosaic_0001>
module attributes {stable_mosaic.version = 11 : i64} {
  func.func @_combined_loss_kernel(%arg0: i32, %arg1: i32, %arg2: memref<8x17xf32, #tpu.memory_space<vmem>>, %arg3: memref<8x3xf32, #tpu.memory_space<vmem>>, %arg4: memref<8x1xf32, #tpu.memory_space<vmem>>, %arg5: memref<8x1xf32, #tpu.memory_space<vmem>>) attributes {dimension_semantics = [#tpu.dimension_semantics<parallel>, #tpu.dimension_semantics<arbitrary>], iteration_bounds = array<i64: 1, 1>, scalar_prefetch = 0 : i64, scratch_operands = 1 : i64, tpu.core_type = #tpu.core_type<tc>, window_params = [{transform_indices = @transform_0, window_bounds = array<i64: 8, 17>}, {transform_indices = @transform_1, window_bounds = array<i64: 8, 3>}, {transform_indices = @transform_2, window_bounds = array<i64: 8, 1>}]} {
    %c0_i32 = arith.constant 0 : i32
    %0 = arith.cmpi eq, %arg1, %c0_i32 : i32
    %1 = arith.extui %0 : i1 to i32
    %c0_i32_0 = arith.constant 0 : i32
    %2 = arith.cmpi ne, %1, %c0_i32_0 : i32
    scf.if %2 {
      %cst_20 = arith.constant 0.000000e+00 : f32
      %58 = vector.broadcast %cst_20 : f32 to vector<8x1xf32>
      %c0_21 = arith.constant 0 : index
      %c0_22 = arith.constant 0 : index
      %59 = vector.load %arg5[%c0_21, %c0_22] : memref<8x1xf32, #tpu.memory_space<vmem>>, vector<8x1xf32>
      tpu.vector_store %arg5[%c0_21, %c0_22], %58 {strides = array<i32>} : memref<8x1xf32, #tpu.memory_space<vmem>>, vector<8x1xf32>,
    } else {
    }
    %c1_i32 = arith.constant 1 : i32
    %3 = arith.muli %arg0, %c1_i32 : i32
    %4 = arith.addi %3, %arg1 : i32
    %c8_i32 = arith.constant 8 : i32
    %5 = arith.muli %4, %c8_i32 : i32
    %6 = tpu.iota {dimensions = array<i32: 0>} : vector<8x1xi32>
    %7 = vector.broadcast %5 : i32 to vector<8x1xi32>
    %8 = arith.addi %7, %6 : vector<8x1xi32>
    %c8_i32_1 = arith.constant 8 : i32
    %9 = vector.broadcast %c8_i32_1 : i32 to vector<8x1xi32>
    %10 = arith.cmpi slt, %8, %9 : vector<8x1xi32>
    %c0 = arith.constant 0 : index
    %c0_2 = arith.constant 0 : index
    %11 = vector.load %arg2[%c0, %c0_2] : memref<8x17xf32, #tpu.memory_space<vmem>>, vector<8x17xf32>
    %12 = vector.extract_strided_slice %11 {offsets = [0, 0], sizes = [8, 16], strides = [1, 1]} : vector<8x17xf32> to vector<8x16xf32>
    %13 = vector.extract_strided_slice %11 {offsets = [0, 16], sizes = [8, 1], strides = [1, 1]} : vector<8x17xf32> to vector<8x1xf32>
    %c0_3 = arith.constant 0 : index
    %c0_4 = arith.constant 0 : index
    %14 = vector.load %arg3[%c0_3, %c0_4] : memref<8x3xf32, #tpu.memory_space<vmem>>, vector<8x3xf32>
    %15 = vector.extract_strided_slice %14 {offsets = [0, 0], sizes = [8, 1], strides = [1, 1]} : vector<8x3xf32> to vector<8x1xf32>
    %16 = arith.fptosi %15 : vector<8x1xf32> to vector<8x1xi32>
    %17 = vector.extract_strided_slice %14 {offsets = [0, 1], sizes = [8, 1], strides = [1, 1]} : vector<8x3xf32> to vector<8x1xf32>
    %18 = vector.extract_strided_slice %14 {offsets = [0, 2], sizes = [8, 1], strides = [1, 1]} : vector<8x3xf32> to vector<8x1xf32>
    %cst = arith.constant dense<0xFF800000> : vector<8xf32>
    %19 = vector.multi_reduction <maximumf>, %12, %cst [1] : vector<8x16xf32> to vector<8xf32>
    %20 = vector.shape_cast %19 : vector<8xf32> to vector<8x1xf32>
    %21 = vector.broadcast %20 : vector<8x1xf32> to vector<8x16xf32>
    %22 = arith.subf %12, %21 : vector<8x16xf32>
    %23 = math.exp %22 : vector<8x16xf32>
    %cst_5 = arith.constant dense<0.000000e+00> : vector<8xf32>
    %24 = vector.multi_reduction <add>, %23, %cst_5 [1] : vector<8x16xf32> to vector<8xf32>
    %25 = vector.shape_cast %24 : vector<8xf32> to vector<8x1xf32>
    %26 = math.log %25 : vector<8x1xf32>
    %27 = tpu.iota {dimensions = array<i32: 1>} : vector<8x16xi32>
    %28 = vector.broadcast %16 : vector<8x1xi32> to vector<8x16xi32>
    %29 = arith.cmpi eq, %27, %28 : vector<8x16xi32>
    %cst_6 = arith.constant 0.000000e+00 : f32
    %30 = vector.broadcast %cst_6 : f32 to vector<8x16xf32>
    %31 = arith.select %29, %22, %30 : vector<8x16xi1>, vector<8x16xf32>
    %cst_7 = arith.constant dense<0.000000e+00> : vector<8xf32>
    %32 = vector.multi_reduction <add>, %31, %cst_7 [1] : vector<8x16xf32> to vector<8xf32>
    %33 = vector.shape_cast %32 : vector<8xf32> to vector<8x1xf32>
    %34 = arith.subf %33, %26 : vector<8x1xf32>
    %cst_8 = arith.constant 0.000000e+00 : f32
    %35 = vector.broadcast %cst_8 : f32 to vector<8x1xf32>
    %36 = arith.subf %35, %34 : vector<8x1xf32>
    %37 = arith.subf %17, %13 : vector<8x1xf32>
    %cst_9 = arith.constant 0.000000e+00 : f32
    %38 = vector.broadcast %cst_9 : f32 to vector<8x1xf32>
    %39 = arith.maximumf %37, %38 : vector<8x1xf32>
    %40 = arith.subf %13, %18 : vector<8x1xf32>
    %cst_10 = arith.constant 0.000000e+00 : f32
    %41 = vector.broadcast %cst_10 : f32 to vector<8x1xf32>
    %42 = arith.maximumf %40, %41 : vector<8x1xf32>
    %43 = arith.addf %39, %42 : vector<8x1xf32>
    %cst_11 = arith.constant 8.000000e-01 : f32
    %44 = vector.broadcast %cst_11 : f32 to vector<8x1xf32>
    %45 = arith.mulf %44, %36 : vector<8x1xf32>
    %46 = arith.mulf %43, %43 : vector<8x1xf32>
    %cst_12 = arith.constant 2.000000e-01 : f32
    %47 = vector.broadcast %cst_12 : f32 to vector<8x1xf32>
    %48 = arith.mulf %47, %46 : vector<8x1xf32>
    %49 = arith.addf %45, %48 : vector<8x1xf32>
    %c0_13 = arith.constant 0 : index
    %c0_14 = arith.constant 0 : index
    %50 = vector.load %arg5[%c0_13, %c0_14] : memref<8x1xf32, #tpu.memory_space<vmem>>, vector<8x1xf32>
    %cst_15 = arith.constant 0.000000e+00 : f32
    %51 = vector.broadcast %cst_15 : f32 to vector<8x1xf32>
    %52 = arith.select %10, %49, %51 : vector<8x1xi1>, vector<8x1xf32>
    %53 = arith.addf %50, %52 : vector<8x1xf32>
    %c0_16 = arith.constant 0 : index
    %c0_17 = arith.constant 0 : index
    %54 = vector.load %arg5[%c0_16, %c0_17] : memref<8x1xf32, #tpu.memory_space<vmem>>, vector<8x1xf32>
    tpu.vector_store %arg5[%c0_16, %c0_17], %53 {strides = array<i32>} : memref<8x1xf32, #tpu.memory_space<vmem>>, vector<8x1xf32>,
    %c0_i32_18 = arith.constant 0 : i32
    %55 = arith.cmpi eq, %arg1, %c0_i32_18 : i32
    %56 = arith.extui %55 : i1 to i32
    %c0_i32_19 = arith.constant 0 : i32
    %57 = arith.cmpi ne, %56, %c0_i32_19 : i32
    scf.if %57 {
      %c0_20 = arith.constant 0 : index
      %c0_21 = arith.constant 0 : index
      %58 = vector.load %arg5[%c0_20, %c0_21] : memref<8x1xf32, #tpu.memory_space<vmem>>, vector<8x1xf32>
      %59 = vector.shape_cast %58 : vector<8x1xf32> to vector<1x8x1xf32>
      %cst_22 = arith.constant dense<0.000000e+00> : vector<1xf32>
      %60 = vector.multi_reduction <add>, %59, %cst_22 [1, 2] : vector<1x8x1xf32> to vector<1xf32>
      %61 = vector.shape_cast %60 : vector<1xf32> to vector<1x1x1xf32>
      %62 = vector.extract %61[0, 0, 0] : f32 from vector<1x1x1xf32>
      %cst_23 = arith.constant 1.250000e-01 : f32
      %63 = arith.mulf %62, %cst_23 : f32
      %64 = tpu.iota {dimensions = array<i32: 0>} : vector<8x1xi32>
      %c0_i32_24 = arith.constant 0 : i32
      %65 = vector.broadcast %c0_i32_24 : i32 to vector<8x1xi32>
      %66 = arith.cmpi eq, %64, %65 : vector<8x1xi32>
      %cst_25 = arith.constant 0.000000e+00 : f32
      %67 = vector.broadcast %63 : f32 to vector<8x1xf32>
      %68 = vector.broadcast %cst_25 : f32 to vector<8x1xf32>
      %69 = arith.select %66, %67, %68 : vector<8x1xi1>, vector<8x1xf32>
      %c0_26 = arith.constant 0 : index
      %c0_27 = arith.constant 0 : index
      %70 = vector.load %arg4[%c0_26, %c0_27] : memref<8x1xf32, #tpu.memory_space<vmem>>, vector<8x1xf32>
      tpu.vector_store %arg4[%c0_26, %c0_27], %69 {strides = array<i32>} : memref<8x1xf32, #tpu.memory_space<vmem>>, vector<8x1xf32>,
    } else {
    }
    return
  }
  func.func @transform_0(%arg0: i32, %arg1: i32) -> (i32, i32) {
    %c1_i32 = arith.constant 1 : i32
    %0 = arith.muli %arg0, %c1_i32 : i32
    %1 = arith.addi %0, %arg1 : i32
    %c0_i32 = arith.constant 0 : i32
    %2 = arith.minsi %1, %c0_i32 : i32
    %c0_i32_0 = arith.constant 0 : i32
    %c0_i32_1 = arith.constant 0 : i32
    return %2, %c0_i32_0 : i32, i32
  }
  func.func @transform_1(%arg0: i32, %arg1: i32) -> (i32, i32) {
    %c1_i32 = arith.constant 1 : i32
    %0 = arith.muli %arg0, %c1_i32 : i32
    %1 = arith.addi %0, %arg1 : i32
    %c0_i32 = arith.constant 0 : i32
    %2 = arith.minsi %1, %c0_i32 : i32
    %c0_i32_0 = arith.constant 0 : i32
    %c0_i32_1 = arith.constant 0 : i32
    return %2, %c0_i32_0 : i32, i32
  }
  func.func @transform_2(%arg0: i32, %arg1: i32) -> (i32, i32) {
    %c0_i32 = arith.constant 0 : i32
    %c0_i32_0 = arith.constant 0 : i32
    return %arg0, %c0_i32 : i32, i32
  }
}

</mosaic_0001>

<llo_original>
// kernel: tpu_custom_call.1
$region0: #{tpu_custom_call.1}
  #allocation0 [shape = 'u32[]', space=smem, size = 0x4, offset = 0x4, fixed_abs, tag = 'smem constant byte address 0x4 - core index']
  #allocation1 [shape = 'u32[144,128]{1,0:T(1,128)}', space=vmem, size = 0x12000, scoped, tag = 'internal scratch']
  #allocation2 [shape = 'f32[8,1]{1,0:T(8,128)}', space=vmem, size = 0x1000, scoped, tag = 'scratch operand']
  %s0 = inlined_call_operand.hbm [shape: f32[8,17], index: 0, kind: input, shape index: {}]
  %s1 = inlined_call_operand.hbm [shape: f32[8,3], index: 1, kind: input, shape index: {}]
  %s2 = inlined_call_operand.hbm [shape: f32[8,1], index: 2, kind: output, shape index: {}]
  %s3 = sld [smem:[#allocation0]]
  $region34: #{tpu_custom_call.1} parent=0
    _
  %s5 = ssub.s32 1, %s3
  %s6 = scalar_select 0, %s5, %s3
  $region1: #{tpu_custom_call.1} parent=0
    #allocation3 [shape = 'u8[4096]{0}', space=vmem, size = 0x1000, scoped, tag = 'input window, operand 0, single buffered']
    #allocation4 [shape = 's32[1]{0}', space=sflag, size = 0x4, scoped, tag = 'scoped memory for tpu_custom_call.1']
    #allocation5 [shape = 's32[1]{0}', space=sflag, size = 0x4, scoped, tag = 'scoped memory for tpu_custom_call.1']
    #allocation6 [shape = 'u8[4096]{0}', space=vmem, size = 0x1000, scoped, tag = 'input window, operand 1, single buffered']
    #allocation7 [shape = 's32[1]{0}', space=sflag, size = 0x4, scoped, tag = 'scoped memory for tpu_custom_call.1']
    #allocation8 [shape = 'u8[4096]{0}', space=vmem, size = 0x1000, scoped, tag = 'output window, operand 0, single buffered']
    %7 = vsyncpa [#allocation4], 0
    %8 = vsyncpa [#allocation7], 0
    %9 = vsyncpa [#allocation5], 0
    // Predicated region
    $region2: #{tpu_custom_call.1} parent=1 // pred_check
      _
    $region3: #{tpu_custom_call.1} parent=1 // pred_check_branch
      %11 = sbr.rel (0) target = $region5
    $region4: #{tpu_custom_call.1} parent=1 // pred_region
      %s12 = sadd.s32 0, 0
      %p13 = scmp.lt.s32.totalorder %s12, 0
      %s14 = scalar_select %p13, %s12, 0
      %s16 = ssub.s32 128, 128
      %17 = vsyncadd [#allocation4], %s16
      %s18 = smul.addr %s14, 128
      %s19 = scalar_lea.hbm %s0, %s18
      %s21 = sshll.u32 [#allocation3], 4
      %s22 = int_to_ptr.vmem [resolvable:$true] %s21
      %24 = dma.hbm_to_vmem [thread:$0]  %s19, 128, %s22, [#allocation4]
    $region5: #{tpu_custom_call.1} parent=1 // pred_fallthru
      _
    // Predicated region
    $region6: #{tpu_custom_call.1} parent=1 // pred_check
      _
    $region7: #{tpu_custom_call.1} parent=1 // pred_check_branch
      %26 = sbr.rel (0) target = $region9
    $region8: #{tpu_custom_call.1} parent=1 // pred_region
      %s27 = sadd.s32 0, 0
      %p28 = scmp.lt.s32.totalorder %s27, 0
      %s29 = scalar_select %p28, %s27, 0
      %s31 = ssub.s32 128, 128
      %32 = vsyncadd [#allocation7], %s31
      %s33 = smul.addr %s29, 128
      %s34 = scalar_lea.hbm %s1, %s33
      %s36 = sshll.u32 [#allocation6], 4
      %s37 = int_to_ptr.vmem [resolvable:$true] %s36
      %39 = dma.hbm_to_vmem [thread:$0]  %s34, 128, %s37, [#allocation7]
    $region9: #{tpu_custom_call.1} parent=1 // pred_fallthru
      _
    // Predicated region
    $region10: #{tpu_custom_call.1} parent=1 // pred_check
      _
    $region11: #{tpu_custom_call.1} parent=1 // pred_check_branch
      %41 = sbr.rel (0) target = $region13
    $region12: #{tpu_custom_call.1} parent=1 // pred_region
      %42 = dma.done [#allocation4], 128
    $region13: #{tpu_custom_call.1} parent=1 // pred_fallthru
      _
    // Predicated region
    $region14: #{tpu_custom_call.1} parent=1 // pred_check
      _
    $region15: #{tpu_custom_call.1} parent=1 // pred_check_branch
      %44 = sbr.rel (0) target = $region17
    $region16: #{tpu_custom_call.1} parent=1 // pred_region
      %45 = dma.done [#allocation7], 128
    $region17: #{tpu_custom_call.1} parent=1 // pred_fallthru
      _
    %s46 = sadd.s32 0, 0
    %p47 = scmp.lt.s32.totalorder %s46, 0
    %s48 = scalar_select %p47, %s46, 0
    %s49 = sadd.s32 0, 0
    %p50 = scmp.lt.s32.totalorder %s49, 0
    %s51 = scalar_select %p50, %s49, 0
    %p52 = scmp.eq.s32.totalorder 0, 0
    // Predicated region
    $region18: #{tpu_custom_call.1} parent=1 // pred_check
      %p53 = pneg %p52
    $region19: #{tpu_custom_call.1} parent=1 // pred_check_branch
      %55 = sbr.rel (%p53) target = $region21
    $region20: #{tpu_custom_call.1} parent=1 // pred_region
      %vm56 = vcmask 7168
      %57 = vst.msk [vmem:[#allocation2] sm:$0xff] %vm56, 0.0
    $region21: #{tpu_custom_call.1} parent=1 // pred_fallthru
      _
    %s58 = sadd.s32 0, 0
    %s59 = smul.u32 %s58, 8
    %v60 = vlaneseq
    %v61 = vshrl.u32 %v60, 7
    %v62 = vstv %s59
    %v63 = vadd.s32 %v62, %v61
    %vm64 = vcmp.lt.s32.totalorder %v63, 8
    %v65 = vld [vmem:[#allocation3] sm:$0xff]
    %v66 = vld [vmem:[#allocation6] sm:$0xff]
    %v67 = vcvt.f32.s32.to.zero.pseudo %v66
    %vm68 = vcmask 130048
    %v69 = vsel %vm68, %v65, -inf
    %70 = vmax.xlane.f32.xlu0 %v69
    %v71 = vpop.xlane.xlu0 %70
    %v72 = vsub.f32 %v65, %v71
    %v73 = vmul.f32 %v72, 1.442695
    %v74 = vpow.pop %v73
    %v75 = vsel %vm68, %v74, 0.0
    %76 = vadd.xlane.f32.xlu0 %v75
    %v77 = vpop.xlane.xlu0 %76
    %v78 = vlog2.pop %v77
    %v79 = vmul.f32 %v78, 0.6931472
    %v80 = vlaneseq
    %v81 = vand.u32 %v80, 127
    %82 = vset.pattern.permute.xlu0 0
    %83 = vperm.xlu0 %82, %v67
    %v84 = vpop.permute.xlu0 %83
    %vm85 = vcmp.eq.s32.totalorder %v81, %v84
    %v86 = vsel %vm85, %v72, 0.0
    %v87 = vsel %vm68, %v86, 0.0
    %88 = vadd.xlane.f32.xlu0 %v87
    %v89 = vpop.xlane.xlu0 %88
    %v90 = vsub.f32 %v89, %v79
    %v91 = vsub.f32 0.0, %v90
    %93 = vrot.lane.b32.xlu0 %v65, 113
    %v94 = vpop.permute.xlu0 %93
    %v96 = vsub.f32 %v66, %v94
    %v97 = vmax.f32 %v96, 0.0
    %99 = vrot.lane.b32.xlu0 %v66, 14
    %v100 = vpop.permute.xlu0 %99
    %v102 = vsub.f32 %v65, %v100
    %v103 = vmax.f32 %v102, 0.0
    %105 = vrot.lane.b32.xlu0 %v103, 113
    %v106 = vpop.permute.xlu0 %105
    %v108 = vadd.f32 %v97, %v106
    %v109 = vmul.f32 %v91, 0.8
    %v110 = vmul.f32 %v108, %v108
    %v111 = vmul.f32 %v110, 0.2
    %v112 = vadd.f32 %v109, %v111
    %v113 = vld [vmem:[#allocation2] sm:$0xff]
    %v114 = vsel %vm64, %v112, 0.0
    %116 = vrot.lane.b32.xlu0 %v114, 127
    %v117 = vpop.permute.xlu0 %116
    %v119 = vadd.f32 %v113, %v117
    %vm120 = vcmask 7168
    %121 = vst.msk [vmem:[#allocation2] sm:$0xff] %vm120, %v119
    // Predicated region
    $region22: #{tpu_custom_call.1} parent=1 // pred_check
      %p122 = pneg %p52
    $region23: #{tpu_custom_call.1} parent=1 // pred_check_branch
      %124 = sbr.rel (%p122) target = $region25
    $region24: #{tpu_custom_call.1} parent=1 // pred_region
      %v125 = vld [vmem:[#allocation2] sm:$0xff]
      %v126 = vsel %vm120, %v125, 0.0
      %127 = vadd.xlane.f32.xlu0 %v126
      %v128 = vpop.xlane.xlu0 %127
      %v129 = vrot.slane %v128, 4
      %v130 = vadd.f32 %v128, %v129
      %v131 = vrot.slane %v130, 2
      %v132 = vadd.f32 %v130, %v131
      %v133 = vrot.slane %v132, 1
      %v134 = vadd.f32 %v132, %v133
      %s135 = vtos %v134
      %s136 = smul.f32 %s135, 0.125
      %vm137 = vcmp.eq.s32.totalorder %v61, 0
      %v138 = vstv %s136
      %v139 = vsel %vm137, %v138, 0.0
      %140 = vst.msk [vmem:[#allocation8] sm:$0xff] %vm120, %v139
    $region25: #{tpu_custom_call.1} parent=1 // pred_fallthru
      _
    // Predicated region
    $region26: #{tpu_custom_call.1} parent=1 // pred_check
      _
    $region27: #{tpu_custom_call.1} parent=1 // pred_check_branch
      %142 = sbr.rel (0) target = $region29
    $region28: #{tpu_custom_call.1} parent=1 // pred_region
      %s144 = ssub.s32 128, 128
      %145 = vsyncadd [#allocation5], %s144
      %s147 = sshll.u32 [#allocation8], 4
      %s148 = int_to_ptr.vmem [resolvable:$true] %s147
      %150 = dma.vmem_to_hbm [thread:$0]  %s148, 128, %s2, [#allocation5]
    $region29: #{tpu_custom_call.1} parent=1 // pred_fallthru
      _
    // Predicated region
    $region30: #{tpu_custom_call.1} parent=1 // pred_check
      _
    $region31: #{tpu_custom_call.1} parent=1 // pred_check_branch
      %152 = sbr.rel (0) target = $region33
    $region32: #{tpu_custom_call.1} parent=1 // pred_region
      %153 = dma.done [#allocation5], 128
    $region33: #{tpu_custom_call.1} parent=1 // pred_fallthru
      _
    %154 = vsyncpa [#allocation4], 1
    %155 = vsyncpa [#allocation7], 1
    %156 = vsyncpa [#allocation5], 1

</llo_original>
